<compile_context>
chip_gen: v7x
topology: tpu7x:2x2x1
jax: 0.10.0
libtpu: 0.0.40
codegen_flags: <defaults>
</compile_context>

<pallas_src>
import jax
import jax.numpy as jnp
from jax.experimental import pallas as pl
from jax.experimental.pallas import tpu as pltpu


def _round_up(x, m):
    return (x + m - 1) // m * m


def _make_embedding_kernel(tokens_per_step, dma_pool):
    T, K = tokens_per_step, dma_pool

    def kernel(ids_ref, table_hbm, out_ref, sems):
        # ids_ref  : SMEM int32[n_pad]     (scalar-prefetched token ids)
        # table_hbm: HBM  f32[vocab, dim]  (raw ref, manual DMA gather)
        # out_ref  : VMEM f32[T, dim]      (pipeline-managed output block)
        # sems     : pool of K DMA semaphores
        base = pl.program_id(0) * T

        def start(t):
            row = ids_ref[base + t]
            pltpu.make_async_copy(
                table_hbm.at[pl.ds(row, 1), :],
                out_ref.at[pl.ds(t, 1), :],
                sems.at[t % K],
            ).start()

        def wait(t):
            # Same-shaped descriptor on the same semaphore slot; the indices
            # are irrelevant for the wait itself.
            pltpu.make_async_copy(
                table_hbm.at[pl.ds(0, 1), :],
                out_ref.at[pl.ds(0, 1), :],
                sems.at[t % K],
            ).wait()

        # Prime the DMA pool.
        @pl.loop(0, K)
        def _(t):
            start(t)

        # Steady state: recycle a slot (wait), then issue the next row copy.
        @pl.loop(K, T)
        def _(t):
            wait(t - K)
            start(t)

        # Drain the remaining in-flight copies before the block is written back.
        @pl.loop(T - K, T)
        def _(t):
            wait(t)

    return kernel


def embedding_lookup(indices, table, *, tokens_per_step=256, dma_pool=16):
    """Pallas equivalent of table[indices] (nn.Embedding forward)."""
    vocab, dim = table.shape

    flat_ids = indices.reshape(-1).astype(jnp.int32)
    # PyTorch leaves out-of-range ids undefined; clamping keeps in-range
    # semantics identical while avoiding a hardware DMA fault.
    flat_ids = jnp.clip(flat_ids, 0, vocab - 1)
    n = flat_ids.shape[0]

    # Tokens per grid step: sublane-full (multiple of 8), capped by request.
    T = min(tokens_per_step, _round_up(n, 8))
    K = min(dma_pool, T)
    n_pad = _round_up(n, T)
    if n_pad != n:
        flat_ids = jnp.pad(flat_ids, (0, n_pad - n))  # id 0 is always valid

    grid = (n_pad // T,)
    kernel = _make_embedding_kernel(T, K)

    bytes_moved = n_pad * dim * table.dtype.itemsize * 2 + n_pad * 4

    out_flat = pl.pallas_call(
        kernel,
        out_shape=jax.ShapeDtypeStruct((n_pad, dim), table.dtype),
        grid_spec=pltpu.PrefetchScalarGridSpec(
            num_scalar_prefetch=1,               # flat_ids -> SMEM
            grid=grid,
            in_specs=[
                # Whole table stays in HBM; rows gathered by manual DMA.
                pl.BlockSpec(memory_space=pl.ANY),
            ],
            out_specs=pl.BlockSpec((T, dim), lambda i, ids: (i, 0)),
            scratch_shapes=[pltpu.SemaphoreType.DMA((K,))],
        ),
        compiler_params=pltpu.CompilerParams(
            dimension_semantics=("parallel",)),
        cost_estimate=pl.CostEstimate(
            flops=0, transcendentals=0, bytes_accessed=bytes_moved),
    )(flat_ids, table)

    if n_pad != n:
        out_flat = out_flat[:n]
    return out_flat.reshape(indices.shape + (dim,))


class MyEmbedding:
    """JAX/Pallas port of the PyTorch MyEmbedding module."""

    def __init__(self, weight=None, num_embeddings=20000, embedding_dim=512):
        if weight is not None:
            self.weight = jnp.asarray(weight, dtype=jnp.float32)
        else:
            # Deterministic synthetic init (module default: 20000 x 512).
            key = jax.random.PRNGKey(0)
            self.weight = jax.random.normal(
                key, (num_embeddings, embedding_dim), jnp.float32)

    def __call__(self, indices):
        return embedding_lookup(indices, self.weight)


if __name__ == "__main__":
    key = jax.random.PRNGKey(0)
    wkey, ikey = jax.random.split(key)

    # Small but representative shapes: vocab=1000, dim=512 (module's
    # embedding_dim), tokens = batch 2 x seq 8.
    vocab, dim = 1000, 512
    batch, seq = 2, 8

    weight = jax.random.normal(wkey, (vocab, dim), jnp.float32)
    indices = jax.random.randint(ikey, (batch, seq), 0, vocab, jnp.int32)

    model = MyEmbedding(weight)
    out = jax.block_until_ready(model(indices))

    # Reference: plain gather.
    ref = weight[indices]
    assert out.shape == (batch, seq, dim), out.shape
    assert out.dtype == jnp.float32
    assert jnp.allclose(out, ref), "Pallas embedding mismatch vs reference gather"

    print("KERNEL_OK")
</pallas_src>

<mosaic_0001>
module attributes {stable_mosaic.version = 11 : i64} {
  func.func @kernel(%arg0: i32, %arg1: memref<16xi32, #tpu.memory_space<smem>>, %arg2: memref<1000x512xf32, #tpu.memory_space<any>>, %arg3: memref<16x512xf32, #tpu.memory_space<vmem>>, %arg4: memref<16x!tpu.dma_semaphore, #tpu.memory_space<semaphore_mem>>) attributes {dimension_semantics = [#tpu.dimension_semantics<parallel>], iteration_bounds = array<i64: 1>, scalar_prefetch = 1 : i64, scratch_operands = 1 : i64, tpu.core_type = #tpu.core_type<tc>, window_params = [{}, {transform_indices = @transform_1, window_bounds = array<i64: 16, 512>}]} {
    %c16_i32 = arith.constant 16 : i32
    %0 = arith.muli %arg0, %c16_i32 : i32
    %c0_i32 = arith.constant 0 : i32
    %c16_i32_0 = arith.constant 16 : i32
    %1 = arith.addi %c0_i32, %c16_i32_0 : i32
    %c1_i32 = arith.constant 1 : i32
    scf.for %arg5 = %c0_i32 to %1 step %c1_i32  : i32 {
      %c1_i32_10 = arith.constant 1 : i32
      %4 = arith.muli %arg5, %c1_i32_10 : i32
      %c0_i32_11 = arith.constant 0 : i32
      %5 = arith.addi %c0_i32_11, %4 : i32
      %6 = arith.addi %0, %5 : i32
      %7 = arith.index_cast %6 : i32 to index
      %8 = memref.load %arg1[%7] : memref<16xi32, #tpu.memory_space<smem>>
      %c16_i32_12 = arith.constant 16 : i32
      %c0_i32_13 = arith.constant 0 : i32
      %9 = arith.cmpi eq, %c16_i32_12, %c0_i32_13 : i32
      %c1_i32_14 = arith.constant 1 : i32
      %10 = arith.select %9, %c1_i32_14, %c16_i32_12 : i32
      %11 = arith.remsi %5, %10 : i32
      %c0_i32_15 = arith.constant 0 : i32
      %12 = arith.cmpi ne, %11, %c0_i32_15 : i32
      %c0_i32_16 = arith.constant 0 : i32
      %13 = arith.cmpi slt, %11, %c0_i32_16 : i32
      %c0_i32_17 = arith.constant 0 : i32
      %14 = arith.cmpi slt, %10, %c0_i32_17 : i32
      %15 = arith.xori %13, %14 : i1
      %16 = arith.andi %15, %12 : i1
      %17 = arith.addi %11, %10 : i32
      %18 = arith.select %16, %17, %11 : i32
      %c0_i32_18 = arith.constant 0 : i32
      %19 = tpu.memref_slice %arg2[%8, %c0_i32_18] : memref<1000x512xf32, #tpu.memory_space<any>> -> memref<1x512xf32, #tpu.memory_space<any>>
      %c0_i32_19 = arith.constant 0 : i32
      %20 = tpu.memref_slice %arg3[%5, %c0_i32_19] : memref<16x512xf32, #tpu.memory_space<vmem>> -> memref<1x512xf32, #tpu.memory_space<vmem>>
      %21 = tpu.memref_slice %arg4[%18] : memref<16x!tpu.dma_semaphore, #tpu.memory_space<semaphore_mem>> -> memref<1x!tpu.dma_semaphore, #tpu.memory_space<semaphore_mem>>
      %22 = tpu.memref_squeeze %21 : memref<1x!tpu.dma_semaphore, #tpu.memory_space<semaphore_mem>> -> memref<!tpu.dma_semaphore, #tpu.memory_space<semaphore_mem>>
      tpu.enqueue_dma source(%19 : memref<1x512xf32, #tpu.memory_space<any>>) target(%20 : memref<1x512xf32, #tpu.memory_space<vmem>>) target_semaphore(%22 : memref<!tpu.dma_semaphore, #tpu.memory_space<semaphore_mem>>)
    }
    %c16_i32_1 = arith.constant 16 : i32
    %c0_i32_2 = arith.constant 0 : i32
    %c0_i32_3 = arith.constant 0 : i32
    %2 = arith.addi %c0_i32_2, %c0_i32_3 : i32
    %c1_i32_4 = arith.constant 1 : i32
    scf.for %arg5 = %c0_i32_2 to %2 step %c1_i32_4  : i32 {
      %c1_i32_10 = arith.constant 1 : i32
      %4 = arith.muli %arg5, %c1_i32_10 : i32
      %c16_i32_11 = arith.constant 16 : i32
      %5 = arith.addi %c16_i32_11, %4 : i32
      %c16_i32_12 = arith.constant 16 : i32
      %6 = arith.subi %5, %c16_i32_12 : i32
      %c16_i32_13 = arith.constant 16 : i32
      %c0_i32_14 = arith.constant 0 : i32
      %7 = arith.cmpi eq, %c16_i32_13, %c0_i32_14 : i32
      %c1_i32_15 = arith.constant 1 : i32
      %8 = arith.select %7, %c1_i32_15, %c16_i32_13 : i32
      %9 = arith.remsi %6, %8 : i32
      %c0_i32_16 = arith.constant 0 : i32
      %10 = arith.cmpi ne, %9, %c0_i32_16 : i32
      %c0_i32_17 = arith.constant 0 : i32
      %11 = arith.cmpi slt, %9, %c0_i32_17 : i32
      %c0_i32_18 = arith.constant 0 : i32
      %12 = arith.cmpi slt, %8, %c0_i32_18 : i32
      %13 = arith.xori %11, %12 : i1
      %14 = arith.andi %13, %10 : i1
      %15 = arith.addi %9, %8 : i32
      %16 = arith.select %14, %15, %9 : i32
      %c0_i32_19 = arith.constant 0 : i32
      %c0_i32_20 = arith.constant 0 : i32
      %17 = tpu.memref_slice %arg2[%c0_i32_19, %c0_i32_20] : memref<1000x512xf32, #tpu.memory_space<any>> -> memref<1x512xf32, #tpu.memory_space<any>>
      %c0_i32_21 = arith.constant 0 : i32
      %c0_i32_22 = arith.constant 0 : i32
      %18 = tpu.memref_slice %arg3[%c0_i32_21, %c0_i32_22] : memref<16x512xf32, #tpu.memory_space<vmem>> -> memref<1x512xf32, #tpu.memory_space<vmem>>
      %19 = tpu.memref_slice %arg4[%16] : memref<16x!tpu.dma_semaphore, #tpu.memory_space<semaphore_mem>> -> memref<1x!tpu.dma_semaphore, #tpu.memory_space<semaphore_mem>>
      %20 = tpu.memref_squeeze %19 : memref<1x!tpu.dma_semaphore, #tpu.memory_space<semaphore_mem>> -> memref<!tpu.dma_semaphore, #tpu.memory_space<semaphore_mem>>
      tpu.wait_dma2 semaphore(%20 : memref<!tpu.dma_semaphore, #tpu.memory_space<semaphore_mem>>) src(%17 : memref<1x512xf32, #tpu.memory_space<any>>) dst(%18 : memref<1x512xf32, #tpu.memory_space<vmem>>)
      %21 = arith.addi %0, %5 : i32
      %22 = arith.index_cast %21 : i32 to index
      %23 = memref.load %arg1[%22] : memref<16xi32, #tpu.memory_space<smem>>
      %c16_i32_23 = arith.constant 16 : i32
      %c0_i32_24 = arith.constant 0 : i32
      %24 = arith.cmpi eq, %c16_i32_23, %c0_i32_24 : i32
      %c1_i32_25 = arith.constant 1 : i32
      %25 = arith.select %24, %c1_i32_25, %c16_i32_23 : i32
      %26 = arith.remsi %5, %25 : i32
      %c0_i32_26 = arith.constant 0 : i32
      %27 = arith.cmpi ne, %26, %c0_i32_26 : i32
      %c0_i32_27 = arith.constant 0 : i32
      %28 = arith.cmpi slt, %26, %c0_i32_27 : i32
      %c0_i32_28 = arith.constant 0 : i32
      %29 = arith.cmpi slt, %25, %c0_i32_28 : i32
      %30 = arith.xori %28, %29 : i1
      %31 = arith.andi %30, %27 : i1
      %32 = arith.addi %26, %25 : i32
      %33 = arith.select %31, %32, %26 : i32
      %c0_i32_29 = arith.constant 0 : i32
      %34 = tpu.memref_slice %arg2[%23, %c0_i32_29] : memref<1000x512xf32, #tpu.memory_space<any>> -> memref<1x512xf32, #tpu.memory_space<any>>
      %c0_i32_30 = arith.constant 0 : i32
      %35 = tpu.memref_slice %arg3[%5, %c0_i32_30] : memref<16x512xf32, #tpu.memory_space<vmem>> -> memref<1x512xf32, #tpu.memory_space<vmem>>
      %36 = tpu.memref_slice %arg4[%33] : memref<16x!tpu.dma_semaphore, #tpu.memory_space<semaphore_mem>> -> memref<1x!tpu.dma_semaphore, #tpu.memory_space<semaphore_mem>>
      %37 = tpu.memref_squeeze %36 : memref<1x!tpu.dma_semaphore, #tpu.memory_space<semaphore_mem>> -> memref<!tpu.dma_semaphore, #tpu.memory_space<semaphore_mem>>
      tpu.enqueue_dma source(%34 : memref<1x512xf32, #tpu.memory_space<any>>) target(%35 : memref<1x512xf32, #tpu.memory_space<vmem>>) target_semaphore(%37 : memref<!tpu.dma_semaphore, #tpu.memory_space<semaphore_mem>>)
    }
    %c0_i32_5 = arith.constant 0 : i32
    %c0_i32_6 = arith.constant 0 : i32
    %c16_i32_7 = arith.constant 16 : i32
    %3 = arith.addi %c0_i32_6, %c16_i32_7 : i32
    %c1_i32_8 = arith.constant 1 : i32
    scf.for %arg5 = %c0_i32_6 to %3 step %c1_i32_8  : i32 {
      %c1_i32_10 = arith.constant 1 : i32
      %4 = arith.muli %arg5, %c1_i32_10 : i32
      %c0_i32_11 = arith.constant 0 : i32
      %5 = arith.addi %c0_i32_11, %4 : i32
      %c16_i32_12 = arith.constant 16 : i32
      %c0_i32_13 = arith.constant 0 : i32
      %6 = arith.cmpi eq, %c16_i32_12, %c0_i32_13 : i32
      %c1_i32_14 = arith.constant 1 : i32
      %7 = arith.select %6, %c1_i32_14, %c16_i32_12 : i32
      %8 = arith.remsi %5, %7 : i32
      %c0_i32_15 = arith.constant 0 : i32
      %9 = arith.cmpi ne, %8, %c0_i32_15 : i32
      %c0_i32_16 = arith.constant 0 : i32
      %10 = arith.cmpi slt, %8, %c0_i32_16 : i32
      %c0_i32_17 = arith.constant 0 : i32
      %11 = arith.cmpi slt, %7, %c0_i32_17 : i32
      %12 = arith.xori %10, %11 : i1
      %13 = arith.andi %12, %9 : i1
      %14 = arith.addi %8, %7 : i32
      %15 = arith.select %13, %14, %8 : i32
      %c0_i32_18 = arith.constant 0 : i32
      %c0_i32_19 = arith.constant 0 : i32
      %16 = tpu.memref_slice %arg2[%c0_i32_18, %c0_i32_19] : memref<1000x512xf32, #tpu.memory_space<any>> -> memref<1x512xf32, #tpu.memory_space<any>>
      %c0_i32_20 = arith.constant 0 : i32
      %c0_i32_21 = arith.constant 0 : i32
      %17 = tpu.memref_slice %arg3[%c0_i32_20, %c0_i32_21] : memref<16x512xf32, #tpu.memory_space<vmem>> -> memref<1x512xf32, #tpu.memory_space<vmem>>
      %18 = tpu.memref_slice %arg4[%15] : memref<16x!tpu.dma_semaphore, #tpu.memory_space<semaphore_mem>> -> memref<1x!tpu.dma_semaphore, #tpu.memory_space<semaphore_mem>>
      %19 = tpu.memref_squeeze %18 : memref<1x!tpu.dma_semaphore, #tpu.memory_space<semaphore_mem>> -> memref<!tpu.dma_semaphore, #tpu.memory_space<semaphore_mem>>
      tpu.wait_dma2 semaphore(%19 : memref<!tpu.dma_semaphore, #tpu.memory_space<semaphore_mem>>) src(%16 : memref<1x512xf32, #tpu.memory_space<any>>) dst(%17 : memref<1x512xf32, #tpu.memory_space<vmem>>)
    }
    %c16_i32_9 = arith.constant 16 : i32
    return
  }
  func.func @transform_1(%arg0: i32, %arg1: memref<16xi32, #tpu.memory_space<smem>>) -> (i32, i32) {
    %c0_i32 = arith.constant 0 : i32
    %c0_i32_0 = arith.constant 0 : i32
    return %arg0, %c0_i32 : i32, i32
  }
}

</mosaic_0001>

<llo_original>
// kernel: tpu_custom_call.1
$region0: #{tpu_custom_call.1}
  #allocation0 [shape = 'u32[]', space=smem, size = 0x4, offset = 0x4, fixed_abs, tag = 'smem constant byte address 0x4 - core index']
  #allocation1 [shape = 'u32[144,128]{1,0:T(1,128)}', space=vmem, size = 0x12000, scoped, tag = 'internal scratch']
  #allocation2 [shape = 's32[16]{0}', space=sflag, size = 0x40, scoped, tag = 'scratch operand']
  #allocation3 [shape = 's32[1]{0}', space=sflag, size = 0x4, scoped, tag = 'scoped memory for tpu_custom_call.1']
  #allocation4 [shape = 'u8[512]{0}', space=smem, size = 0x200, scoped, tag = 'prefetched SMEM operand 0']
  #allocation7 [shape = 's32[]', space=sflag, size = 0x4, offset = 0, fixed_abs, tag = 'sflag constant byte address 0x0 - dummy sync flag']
  %s0 = inlined_call_operand.hbm [shape: s32[16], index: 0, kind: input, shape index: {}]
  %s1 = inlined_call_operand.hbm [shape: f32[1000,512], index: 1, kind: input, shape index: {}]
  %s2 = inlined_call_operand.hbm [shape: f32[16,512], index: 2, kind: output, shape index: {}]
  %s3 = sld [smem:[#allocation0]]
  $region24: #{tpu_custom_call.1} parent=0
    _
  %s5 = ssub.s32 1, %s3
  %s6 = scalar_select 0, %s5, %s3
  %8 = dma.hbm_to_smem %s0, 16, [#allocation4], [#allocation3]
  %9 = dma.done [#allocation3], 16
  %10 = sfence
  $region1: #{tpu_custom_call.1} parent=0
    #allocation5 [shape = 'u8[32768]{0}', space=vmem, size = 0x8000, scoped, tag = 'output window, operand 0, single buffered']
    #allocation6 [shape = 's32[1]{0}', space=sflag, size = 0x4, scoped, tag = 'scoped memory for tpu_custom_call.1']
    %11 = vsyncpa [#allocation6], 0
    %s12 = smul.u32 0, 16
    loop: start=0, step=1, limit=16
    $region2: #{tpu_custom_call.1} parent=1 // loop_pre_header
      _
    $region3: #{tpu_custom_call.1} parent=1 // loop_header
      %s14 = sphi 0, %s18
      %p15 = scmp.ge.s32.totalorder %s14, 16
    $region4: #{tpu_custom_call.1} parent=1 // loop_header_branch
      %17 = sbr.rel (%p15) target = $region8
    $region5: #{tpu_custom_call.1} parent=1 // loop_body
      %s19 = sadd.s32 %s12, %s14
      %s20 = sld [smem:[#allocation4 + %s19]]
      %p21 = scmp.lt.s32.totalorder %s14, 0
      %s22 = ssub.s32 0, %s14
      %s23 = scalar_select %p21, %s22, %s14
      %s24 = sand.u32 %s23, 15
      %s25 = ssub.s32 0, %s24
      %s26 = scalar_select %p21, %s25, %s24
      %p27 = scmp.ne.s32.totalorder %s26, 0
      %p28 = scmp.lt.s32.totalorder %s26, 0
      %p29 = pnand %p28, %p27
      %p30 = pneg %p29
      %s31 = sadd.s32 %s26, 16
      %s32 = scalar_select %p30, %s31, %s26
      %s33 = sshrl.u32 %s20, 3
      %s34 = sand.u32 %s20, 7
      %s35 = smul.u32 %s33, 32
      %s36 = sadd.s32 %s34, %s35
      %s37 = smul.addr %s36, 16
      %s38 = scalar_lea.hbm %s1, %s37
      %s39 = sshrl.u32 %s14, 3
      %s40 = sand.u32 %s14, 7
      %s41 = smul.u32 %s39, 32
      %s42 = sadd.s32 %s40, %s41
      %s43 = scalar_lea.vmem [#allocation5], %s42
      %s44 = scalar_lea.sflag [#allocation2], %s32
      %s46 = sshll.u32 %s43, 4
      %s47 = int_to_ptr.vmem [resolvable:$true] %s46
      %49 = dma.hbm_to_vmem [thread:$0]  %s38, 64, %s47, %s44, 128, 128, 1
    $region6: #{tpu_custom_call.1} parent=1 // loop_footer
      %s18 = sadd.s32 1, %s14
    $region7: #{tpu_custom_call.1} parent=1 // loop_footer_branch
      %13 = sbr.rel target = $region3
    $region8: #{tpu_custom_call.1} parent=1 // loop_exit
      _
    loop: start=0, step=1, limit=16
    $region9: #{tpu_custom_call.1} parent=1 // loop_pre_header
      _
    $region10: #{tpu_custom_call.1} parent=1 // loop_header
      %s51 = sphi 0, %s55
      %p52 = scmp.ge.s32.totalorder %s51, 16
    $region11: #{tpu_custom_call.1} parent=1 // loop_header_branch
      %54 = sbr.rel (%p52) target = $region15
    $region12: #{tpu_custom_call.1} parent=1 // loop_body
      %p56 = scmp.lt.s32.totalorder %s51, 0
      %s57 = ssub.s32 0, %s51
      %s58 = scalar_select %p56, %s57, %s51
      %s59 = sand.u32 %s58, 15
      %s60 = ssub.s32 0, %s59
      %s61 = scalar_select %p56, %s60, %s59
      %p62 = scmp.ne.s32.totalorder %s61, 0
      %p63 = scmp.lt.s32.totalorder %s61, 0
      %p64 = pnand %p63, %p62
      %p65 = pneg %p64
      %s66 = sadd.s32 %s61, 16
      %s67 = scalar_select %p65, %s66, %s61
      %s68 = scalar_lea.sflag [#allocation2], %s67
      %s69 = smul.u32 1, 4
      %s70 = sshll.u32 %s69, 4
      %71 = dma.done %s68, %s70
    $region13: #{tpu_custom_call.1} parent=1 // loop_footer
      %s55 = sadd.s32 1, %s51
    $region14: #{tpu_custom_call.1} parent=1 // loop_footer_branch
      %50 = sbr.rel target = $region10
    $region15: #{tpu_custom_call.1} parent=1 // loop_exit
      _
    // Predicated region
    $region16: #{tpu_custom_call.1} parent=1 // pred_check
      _
    $region17: #{tpu_custom_call.1} parent=1 // pred_check_branch
      %73 = sbr.rel (0) target = $region19
    $region18: #{tpu_custom_call.1} parent=1 // pred_region
      %s75 = ssub.s32 1024, 1024
      %76 = vsyncadd [#allocation6], %s75
      %s77 = sshll.u32 [#allocation5], 4
      %s78 = int_to_ptr.vmem [resolvable:$true] %s77
      %83 = dma.vmem_to_hbm [thread:$0]  %s78, 1024, %s2, [#allocation6], 512, 512, 32
    $region19: #{tpu_custom_call.1} parent=1 // pred_fallthru
      _
    // Predicated region
    $region20: #{tpu_custom_call.1} parent=1 // pred_check
      _
    $region21: #{tpu_custom_call.1} parent=1 // pred_check_branch
      %85 = sbr.rel (0) target = $region23
    $region22: #{tpu_custom_call.1} parent=1 // pred_region
      %86 = dma.done [#allocation6], 1024
    $region23: #{tpu_custom_call.1} parent=1 // pred_fallthru
      _
    %87 = vsyncpa [#allocation6], 1
  %88 = vsyncmov [#allocation2]
  %s89 = vpop.sfrf %88
  %p90 = scmp.eq.s32.totalorder %s89, 0
  %p91 = pneg %p90
  %93 = shalt.err (%p91)
  %s94 = scalar_lea.sflag [#allocation2], 1
  %95 = vsyncmov %s94
  %s96 = vpop.sfrf %95
  %p97 = scmp.eq.s32.totalorder %s96, 0
  %p98 = pneg %p97
  %100 = shalt.err (%p98)
  %s101 = scalar_lea.sflag [#allocation2], 2
  %102 = vsyncmov %s101
  %s103 = vpop.sfrf %102
  %p104 = scmp.eq.s32.totalorder %s103, 0
  %p105 = pneg %p104
  %107 = shalt.err (%p105)
  %s108 = scalar_lea.sflag [#allocation2], 3
  %109 = vsyncmov %s108
  %s110 = vpop.sfrf %109
  %p111 = scmp.eq.s32.totalorder %s110, 0
  %p112 = pneg %p111
  %114 = shalt.err (%p112)
  %s115 = scalar_lea.sflag [#allocation2], 4
  %116 = vsyncmov %s115
  %s117 = vpop.sfrf %116
  %p118 = scmp.eq.s32.totalorder %s117, 0
  %p119 = pneg %p118
  %121 = shalt.err (%p119)
  %s122 = scalar_lea.sflag [#allocation2], 5
  %123 = vsyncmov %s122
  %s124 = vpop.sfrf %123
  %p125 = scmp.eq.s32.totalorder %s124, 0
  %p126 = pneg %p125
  %128 = shalt.err (%p126)
  %s129 = scalar_lea.sflag [#allocation2], 6
  %130 = vsyncmov %s129
  %s131 = vpop.sfrf %130
  %p132 = scmp.eq.s32.totalorder %s131, 0
  %p133 = pneg %p132
  %135 = shalt.err (%p133)
  %s136 = scalar_lea.sflag [#allocation2], 7
  %137 = vsyncmov %s136
  %s138 = vpop.sfrf %137
  %p139 = scmp.eq.s32.totalorder %s138, 0
  %p140 = pneg %p139
  %142 = shalt.err (%p140)
  %s143 = scalar_lea.sflag [#allocation2], 8
  %144 = vsyncmov %s143
  %s145 = vpop.sfrf %144
  %p146 = scmp.eq.s32.totalorder %s145, 0
  %p147 = pneg %p146
  %149 = shalt.err (%p147)
  %s150 = scalar_lea.sflag [#allocation2], 9
  %151 = vsyncmov %s150
  %s152 = vpop.sfrf %151
  %p153 = scmp.eq.s32.totalorder %s152, 0
  %p154 = pneg %p153
  %156 = shalt.err (%p154)
  %s157 = scalar_lea.sflag [#allocation2], 10
  %158 = vsyncmov %s157
  %s159 = vpop.sfrf %158
  %p160 = scmp.eq.s32.totalorder %s159, 0
  %p161 = pneg %p160
  %163 = shalt.err (%p161)
  %s164 = scalar_lea.sflag [#allocation2], 11
  %165 = vsyncmov %s164
  %s166 = vpop.sfrf %165
  %p167 = scmp.eq.s32.totalorder %s166, 0
  %p168 = pneg %p167
  %170 = shalt.err (%p168)
  %s171 = scalar_lea.sflag [#allocation2], 12
  %172 = vsyncmov %s171
  %s173 = vpop.sfrf %172
  %p174 = scmp.eq.s32.totalorder %s173, 0
  %p175 = pneg %p174
  %177 = shalt.err (%p175)
  %s178 = scalar_lea.sflag [#allocation2], 13
  %179 = vsyncmov %s178
  %s180 = vpop.sfrf %179
  %p181 = scmp.eq.s32.totalorder %s180, 0
  %p182 = pneg %p181
  %184 = shalt.err (%p182)
  %s185 = scalar_lea.sflag [#allocation2], 14
  %186 = vsyncmov %s185
  %s187 = vpop.sfrf %186
  %p188 = scmp.eq.s32.totalorder %s187, 0
  %p189 = pneg %p188
  %191 = shalt.err (%p189)
  %s192 = scalar_lea.sflag [#allocation2], 15
  %193 = vsyncmov %s192
  %s194 = vpop.sfrf %193
  %p195 = scmp.eq.s32.totalorder %s194, 0
  %p196 = pneg %p195
  %198 = shalt.err (%p196)

</llo_original>
